<compile_context>
chip_gen: v7x
topology: tpu7x:2x2x1
jax: 0.10.0
libtpu: 0.0.40
codegen_flags: <defaults>
</compile_context>

<pallas_src>
import math

import jax
import jax.numpy as jnp
from jax.experimental import pallas as pl
from jax.experimental.pallas import tpu as pltpu


def warm_start_grl_coeff(iter_num, alpha=1.0, lo=0.0, hi=0.1, max_iters=1000):
    """lambda schedule of WarmStartGradientReverseLayer (host-side scalar)."""
    return float(
        2.0 * (hi - lo) / (1.0 + math.exp(-alpha * float(iter_num) / float(max_iters)))
        - (hi - lo) + lo
    )


def _round_up(n, m):
    return ((n + m - 1) // m) * m


def _pad_last(a, target):
    pad = target - a.shape[-1]
    if pad <= 0:
        return a
    return jnp.pad(a, [(0, 0)] * (a.ndim - 1) + [(0, pad)])


def _fused_kernel(x_ref, wb_ref, bb_ref, wh_ref, bh_ref, out_ref):
    # bottleneck: (tb, Din) @ (Din, Dbot) on the MXU with f32 accumulation.
    feats = jnp.dot(x_ref[...], wb_ref[...], preferred_element_type=jnp.float32)
    feats = jnp.maximum(feats + bb_ref[...], 0.0)            # bias + ReLU in f32
    # head (+ adv_head when training): one wide, lane-dense MXU pass.
    out = jnp.dot(feats.astype(wh_ref.dtype), wh_ref[...],
                  preferred_element_type=jnp.float32) + bh_ref[...]
    out_ref[...] = out.astype(out_ref.dtype)


def _pick_batch_tile(batch, per_step_bytes, budget):
    # Largest 8-aligned tile that (a) divides the batch, (b) leaves >= 2 grid
    # steps (v7x's two TensorCores both get work; DMA pipeline overlaps), and
    # (c) fits the VMEM budget.  Full-extent fallback for tiny / odd batches
    # (block_shape == full array dim is always legal).
    for tb in (1024, 512, 256, 128, 64, 32, 16, 8):
        if tb < batch and batch % tb == 0 and per_step_bytes(tb) <= budget:
            return tb
    return batch


def general_module_forward(x, params, *, training=True, iter_num=0,
                           alpha=1.0, lo=0.0, hi=0.1, max_iters=1000,
                           compute_dtype=jnp.bfloat16):
    """Pallas implementation of GeneralModule.forward.

    bottleneck = Linear(backbone_dim, bottleneck_dim) + ReLU (canonical choice),
    head / adv_head = Linear(bottleneck_dim, num_classes).
    """
    B, d_in = x.shape
    w_b = params["w_b"]
    b_b = params["b_b"].reshape(1, -1).astype(jnp.float32)
    w_h = params["w_h"]
    b_h = params["b_h"].reshape(1, -1).astype(jnp.float32)
    w_a = params["w_a"]
    b_a = params["b_a"].reshape(1, -1).astype(jnp.float32)
    d_bot = w_b.shape[1]
    n_cls = w_h.shape[1]
    assert w_b.shape == (d_in, d_bot)
    assert w_h.shape == (d_bot, n_cls) and w_a.shape == (d_bot, n_cls)

    # Same schedule as WarmStartGradientReverseLayer; no effect on the forward
    # value (GradientReverseFunction.forward is x * 1.0).
    # TODO(synk): gradient reversal (grad * -coeff into the bottleneck) needs a
    # jax.custom_vjp wrapper around this call; forward-only kernel can't express it.
    _coeff = warm_start_grl_coeff(iter_num, alpha, lo, hi, max_iters)

    # Pad head width to a multiple of 128 lanes (unmasked vst, full MXU/VPU
    # lanes) and, when training, fuse head + adv_head into one wide matmul.
    n_cls_p = _round_up(n_cls, 128)
    if training:
        w_head = jnp.concatenate(
            [_pad_last(w_h, n_cls_p), _pad_last(w_a, n_cls_p)], axis=1)
        b_head = jnp.concatenate(
            [_pad_last(b_h, n_cls_p), _pad_last(b_a, n_cls_p)], axis=1)
    else:
        # Eval drops the adv head entirely: no wasted MXU work or HBM writeback.
        w_head = _pad_last(w_h, n_cls_p)
        b_head = _pad_last(b_h, n_cls_p)
    out_width = w_head.shape[1]

    out_dtype = x.dtype
    x_c = x.astype(compute_dtype)
    w_b_c = w_b.astype(compute_dtype)
    w_head_c = w_head.astype(compute_dtype)

    bw = jnp.dtype(compute_dtype).itemsize     # activation / weight bytes (bf16 = 2)
    bo = jnp.dtype(out_dtype).itemsize         # output bytes

    # VMEM budget: resident weights/biases (conservatively counted as if
    # double-buffered, in case the single-buffer request is ignored) plus the
    # double-buffered x tile and output tile per pipeline step.
    resident = 2 * ((d_in * d_bot + d_bot * out_width) * bw
                    + (d_bot + out_width) * 4)
    per_step = lambda tb: 2 * tb * d_in * bw + 2 * tb * out_width * bo

    try:
        vmem_cap = int(pltpu.get_tpu_info().vmem_capacity_bytes)
    except Exception:
        vmem_cap = 64 * 1024 * 1024            # v7x physical VMEM (safe minimum)
    budget = (3 * vmem_cap) // 4               # headroom for Mosaic internal scratch

    tb = _pick_batch_tile(B, per_step, budget - resident)
    grid = (pl.cdiv(B, tb),)
    vmem_limit = int(min(budget, max(resident + per_step(tb) + (4 << 20), 8 << 20)))

    flops = 2 * B * (d_in * d_bot + d_bot * out_width)
    bytes_accessed = (B * d_in * bw
                      + (d_in * d_bot + d_bot * out_width) * bw
                      + (d_bot + out_width) * 4
                      + B * out_width * bo)

    batch_map = lambda i: (i, 0)
    const_map = lambda i: (0, 0)

    def build(single_buffer_weights):
        if single_buffer_weights:
            wspec = lambda shape: pl.BlockSpec(shape, const_map,
                                               pipeline_mode=pl.Buffered(1))
        else:
            wspec = lambda shape: pl.BlockSpec(shape, const_map)
        return pl.pallas_call(
            _fused_kernel,
            out_shape=jax.ShapeDtypeStruct((B, out_width), out_dtype),
            grid_spec=pltpu.PrefetchScalarGridSpec(
                num_scalar_prefetch=0,
                grid=grid,
                in_specs=[
                    pl.BlockSpec((tb, d_in), batch_map),   # x tile (bf16, pipelined)
                    wspec((d_in, d_bot)),                  # bottleneck weight (resident)
                    wspec((1, d_bot)),                     # bottleneck bias (f32)
                    wspec((d_bot, out_width)),             # fused head weight (resident)
                    wspec((1, out_width)),                 # fused head bias (f32)
                ],
                out_specs=pl.BlockSpec((tb, out_width), batch_map),  # lane-dense
            ),
            compiler_params=pltpu.CompilerParams(
                dimension_semantics=("parallel",),
                vmem_limit_bytes=vmem_limit,
            ),
            cost_estimate=pl.CostEstimate(
                flops=int(flops), transcendentals=0,
                bytes_accessed=int(bytes_accessed)),
        )

    args = (x_c, w_b_c, b_b, w_head_c, b_head)
    try:
        out = build(True)(*args)
    except Exception:
        # Fallback for JAX builds that reject pipeline_mode=pl.Buffered(1) on a
        # top-level BlockSpec; only costs extra resident-weight VMEM.
        out = build(False)(*args)

    if training:
        return out[:, :n_cls], out[:, n_cls_p:n_cls_p + n_cls]
    return out[:, :n_cls]


def _reference(x, params, compute_dtype=jnp.bfloat16):
    # Pure-JAX reference mirroring the PyTorch forward with the same bf16
    # rounding of activations/weights and f32 accumulation as the kernel.
    f32 = jnp.float32
    rt = lambda a: a.astype(compute_dtype).astype(f32)     # bf16 round-trip
    feats = jnp.maximum(rt(x) @ rt(params["w_b"])
                        + params["b_b"].reshape(1, -1).astype(f32), 0.0)
    outputs = rt(feats) @ rt(params["w_h"]) + params["b_h"].reshape(1, -1).astype(f32)
    # GRL forward is identity; only the backward flips/scales the gradient.
    outputs_adv = rt(feats) @ rt(params["w_a"]) + params["b_a"].reshape(1, -1).astype(f32)
    return outputs.astype(x.dtype), outputs_adv.astype(x.dtype)


if __name__ == "__main__":
    key = jax.random.PRNGKey(0)
    # Small but representative domain-adaptation shapes; num_classes=31 is NOT
    # a multiple of 128 so the lane-padding path is exercised.
    B, backbone_dim, bottleneck_dim, num_classes = 16, 256, 128, 31

    ks = jax.random.split(key, 7)
    x = jax.random.normal(ks[0], (B, backbone_dim), dtype=jnp.float32)
    params = {
        "w_b": jax.random.normal(ks[1], (backbone_dim, bottleneck_dim), jnp.float32) * 0.05,
        "b_b": jax.random.normal(ks[2], (1, bottleneck_dim), jnp.float32) * 0.01,
        "w_h": jax.random.normal(ks[3], (bottleneck_dim, num_classes), jnp.float32) * 0.05,
        "b_h": jax.random.normal(ks[4], (1, num_classes), jnp.float32) * 0.01,
        "w_a": jax.random.normal(ks[5], (bottleneck_dim, num_classes), jnp.float32) * 0.05,
        "b_a": jax.random.normal(ks[6], (1, num_classes), jnp.float32) * 0.01,
    }

    # training path: (outputs, outputs_adv)
    outputs, outputs_adv = general_module_forward(x, params, training=True, iter_num=3)
    jax.block_until_ready((outputs, outputs_adv))
    assert outputs.shape == (B, num_classes) and outputs_adv.shape == (B, num_classes)

    ref_out, ref_adv = _reference(x, params)
    assert jnp.allclose(outputs, ref_out, atol=1e-2, rtol=1e-2), "head mismatch"
    assert jnp.allclose(outputs_adv, ref_adv, atol=1e-2, rtol=1e-2), "adv_head mismatch"

    # eval path: outputs only (adv head entirely skipped)
    out_eval = jax.block_until_ready(general_module_forward(x, params, training=False))
    assert out_eval.shape == (B, num_classes)
    assert jnp.allclose(out_eval, ref_out, atol=1e-2, rtol=1e-2), "eval mismatch"

    print("KERNEL_OK")
</pallas_src>

<mosaic_0001>
module attributes {stable_mosaic.version = 11 : i64} {
  func.func @_fused_kernel(%arg0: i32, %arg1: memref<8x256xbf16, #tpu.memory_space<vmem>>, %arg2: memref<256x128xbf16, #tpu.memory_space<vmem>>, %arg3: memref<1x128xf32, #tpu.memory_space<vmem>>, %arg4: memref<128x256xbf16, #tpu.memory_space<vmem>>, %arg5: memref<1x256xf32, #tpu.memory_space<vmem>>, %arg6: memref<8x256xf32, #tpu.memory_space<vmem>>) attributes {dimension_semantics = [#tpu.dimension_semantics<parallel>], iteration_bounds = array<i64: 2>, scalar_prefetch = 0 : i64, scratch_operands = 0 : i64, tpu.core_type = #tpu.core_type<tc>, window_params = [{transform_indices = @transform_0, window_bounds = array<i64: 8, 256>}, {pipeline_mode = #tpu.pipeline_mode<synchronous>, transform_indices = @transform_1, window_bounds = array<i64: 256, 128>}, {pipeline_mode = #tpu.pipeline_mode<synchronous>, transform_indices = @transform_2, window_bounds = array<i64: 1, 128>}, {pipeline_mode = #tpu.pipeline_mode<synchronous>, transform_indices = @transform_3, window_bounds = array<i64: 128, 256>}, {pipeline_mode = #tpu.pipeline_mode<synchronous>, transform_indices = @transform_4, window_bounds = array<i64: 1, 256>}, {transform_indices = @transform_5, window_bounds = array<i64: 8, 256>}]} {
    %c0 = arith.constant 0 : index
    %c0_0 = arith.constant 0 : index
    %0 = vector.load %arg1[%c0, %c0_0] : memref<8x256xbf16, #tpu.memory_space<vmem>>, vector<8x256xbf16>
    %c0_1 = arith.constant 0 : index
    %c0_2 = arith.constant 0 : index
    %1 = vector.load %arg2[%c0_1, %c0_2] : memref<256x128xbf16, #tpu.memory_space<vmem>>, vector<256x128xbf16>
    %cst = arith.constant dense<0.000000e+00> : vector<8x128xf32>
    %2 = tpu.matmul %0, %1, %cst {dimension_numbers = #tpu.dot_dimension_numbers<[1], [0], [0], [1], [0, 0, 1, 1], [], []>} : vector<8x256xbf16>, vector<256x128xbf16>, vector<8x128xf32> -> vector<8x128xf32>
    %c0_3 = arith.constant 0 : index
    %c0_4 = arith.constant 0 : index
    %3 = vector.load %arg3[%c0_3, %c0_4] : memref<1x128xf32, #tpu.memory_space<vmem>>, vector<1x128xf32>
    %4 = vector.broadcast %3 : vector<1x128xf32> to vector<8x128xf32>
    %5 = arith.addf %2, %4 : vector<8x128xf32>
    %cst_5 = arith.constant 0.000000e+00 : f32
    %6 = vector.broadcast %cst_5 : f32 to vector<8x128xf32>
    %7 = arith.maximumf %5, %6 : vector<8x128xf32>
    %8 = arith.truncf %7 : vector<8x128xf32> to vector<8x128xbf16>
    %c0_6 = arith.constant 0 : index
    %c0_7 = arith.constant 0 : index
    %9 = vector.load %arg4[%c0_6, %c0_7] : memref<128x256xbf16, #tpu.memory_space<vmem>>, vector<128x256xbf16>
    %cst_8 = arith.constant dense<0.000000e+00> : vector<8x256xf32>
    %10 = tpu.matmul %8, %9, %cst_8 {dimension_numbers = #tpu.dot_dimension_numbers<[1], [0], [0], [1], [0, 0, 1, 1], [], []>} : vector<8x128xbf16>, vector<128x256xbf16>, vector<8x256xf32> -> vector<8x256xf32>
    %c0_9 = arith.constant 0 : index
    %c0_10 = arith.constant 0 : index
    %11 = vector.load %arg5[%c0_9, %c0_10] : memref<1x256xf32, #tpu.memory_space<vmem>>, vector<1x256xf32>
    %12 = vector.broadcast %11 : vector<1x256xf32> to vector<8x256xf32>
    %13 = arith.addf %10, %12 : vector<8x256xf32>
    %c0_11 = arith.constant 0 : index
    %c0_12 = arith.constant 0 : index
    %14 = vector.load %arg6[%c0_11, %c0_12] : memref<8x256xf32, #tpu.memory_space<vmem>>, vector<8x256xf32>
    tpu.vector_store %arg6[%c0_11, %c0_12], %13 {strides = array<i32>} : memref<8x256xf32, #tpu.memory_space<vmem>>, vector<8x256xf32>,
    return
  }
  func.func @transform_0(%arg0: i32) -> (i32, i32) {
    %c0_i32 = arith.constant 0 : i32
    %c0_i32_0 = arith.constant 0 : i32
    return %arg0, %c0_i32 : i32, i32
  }
  func.func @transform_1(%arg0: i32) -> (i32, i32) {
    %c0_i32 = arith.constant 0 : i32
    %c0_i32_0 = arith.constant 0 : i32
    %c0_i32_1 = arith.constant 0 : i32
    return %c0_i32, %c0_i32_0 : i32, i32
  }
  func.func @transform_2(%arg0: i32) -> (i32, i32) {
    %c0_i32 = arith.constant 0 : i32
    %c0_i32_0 = arith.constant 0 : i32
    %c0_i32_1 = arith.constant 0 : i32
    return %c0_i32, %c0_i32_0 : i32, i32
  }
  func.func @transform_3(%arg0: i32) -> (i32, i32) {
    %c0_i32 = arith.constant 0 : i32
    %c0_i32_0 = arith.constant 0 : i32
    %c0_i32_1 = arith.constant 0 : i32
    return %c0_i32, %c0_i32_0 : i32, i32
  }
  func.func @transform_4(%arg0: i32) -> (i32, i32) {
    %c0_i32 = arith.constant 0 : i32
    %c0_i32_0 = arith.constant 0 : i32
    %c0_i32_1 = arith.constant 0 : i32
    return %c0_i32, %c0_i32_0 : i32, i32
  }
  func.func @transform_5(%arg0: i32) -> (i32, i32) {
    %c0_i32 = arith.constant 0 : i32
    %c0_i32_0 = arith.constant 0 : i32
    return %arg0, %c0_i32 : i32, i32
  }
}

module attributes {stable_mosaic.version = 11 : i64} {
  func.func @_fused_kernel(%arg0: i32, %arg1: memref<8x256xbf16, #tpu.memory_space<vmem>>, %arg2: memref<256x128xbf16, #tpu.memory_space<vmem>>, %arg3: memref<1x128xf32, #tpu.memory_space<vmem>>, %arg4: memref<128x256xbf16, #tpu.memory_space<vmem>>, %arg5: memref<1x256xf32, #tpu.memory_space<vmem>>, %arg6: memref<8x256xf32, #tpu.memory_space<vmem>>) attributes {dimension_semantics = [#tpu.dimension_semantics<parallel>], iteration_bounds = array<i64: 2>, scalar_prefetch = 0 : i64, scratch_operands = 0 : i64, tpu.core_type = #tpu.core_type<tc>, window_params = [{transform_indices = @transform_0, window_bounds = array<i64: 8, 256>}, {pipeline_mode = #tpu.pipeline_mode<synchronous>, transform_indices = @transform_1, window_bounds = array<i64: 256, 128>}, {pipeline_mode = #tpu.pipeline_mode<synchronous>, transform_indices = @transform_2, window_bounds = array<i64: 1, 128>}, {pipeline_mode = #tpu.pipeline_mode<synchronous>, transform_indices = @transform_3, window_bounds = array<i64: 128, 256>}, {pipeline_mode = #tpu.pipeline_mode<synchronous>, transform_indices = @transform_4, window_bounds = array<i64: 1, 256>}, {transform_indices = @transform_5, window_bounds = array<i64: 8, 256>}]} {
    %c0 = arith.constant 0 : index
    %c0_0 = arith.constant 0 : index
    %0 = vector.load %arg1[%c0, %c0_0] : memref<8x256xbf16, #tpu.memory_space<vmem>>, vector<8x256xbf16>
    %c0_1 = arith.constant 0 : index
    %c0_2 = arith.constant 0 : index
    %1 = vector.load %arg2[%c0_1, %c0_2] : memref<256x128xbf16, #tpu.memory_space<vmem>>, vector<256x128xbf16>
    %cst = arith.constant dense<0.000000e+00> : vector<8x128xf32>
    %2 = tpu.matmul %0, %1, %cst {dimension_numbers = #tpu.dot_dimension_numbers<[1], [0], [0], [1], [0, 0, 1, 1], [], []>} : vector<8x256xbf16>, vector<256x128xbf16>, vector<8x128xf32> -> vector<8x128xf32>
    %c0_3 = arith.constant 0 : index
    %c0_4 = arith.constant 0 : index
    %3 = vector.load %arg3[%c0_3, %c0_4] : memref<1x128xf32, #tpu.memory_space<vmem>>, vector<1x128xf32>
    %4 = vector.broadcast %3 : vector<1x128xf32> to vector<8x128xf32>
    %5 = arith.addf %2, %4 : vector<8x128xf32>
    %cst_5 = arith.constant 0.000000e+00 : f32
    %6 = vector.broadcast %cst_5 : f32 to vector<8x128xf32>
    %7 = arith.maximumf %5, %6 : vector<8x128xf32>
    %8 = arith.truncf %7 : vector<8x128xf32> to vector<8x128xbf16>
    %c0_6 = arith.constant 0 : index
    %c0_7 = arith.constant 0 : index
    %9 = vector.load %arg4[%c0_6, %c0_7] : memref<128x256xbf16, #tpu.memory_space<vmem>>, vector<128x256xbf16>
    %cst_8 = arith.constant dense<0.000000e+00> : vector<8x256xf32>
    %10 = tpu.matmul %8, %9, %cst_8 {dimension_numbers = #tpu.dot_dimension_numbers<[1], [0], [0], [1], [0, 0, 1, 1], [], []>} : vector<8x128xbf16>, vector<128x256xbf16>, vector<8x256xf32> -> vector<8x256xf32>
    %c0_9 = arith.constant 0 : index
    %c0_10 = arith.constant 0 : index
    %11 = vector.load %arg5[%c0_9, %c0_10] : memref<1x256xf32, #tpu.memory_space<vmem>>, vector<1x256xf32>
    %12 = vector.broadcast %11 : vector<1x256xf32> to vector<8x256xf32>
    %13 = arith.addf %10, %12 : vector<8x256xf32>
    %c0_11 = arith.constant 0 : index
    %c0_12 = arith.constant 0 : index
    %14 = vector.load %arg6[%c0_11, %c0_12] : memref<8x256xf32, #tpu.memory_space<vmem>>, vector<8x256xf32>
    tpu.vector_store %arg6[%c0_11, %c0_12], %13 {strides = array<i32>} : memref<8x256xf32, #tpu.memory_space<vmem>>, vector<8x256xf32>,
    return
  }
  func.func @transform_0(%arg0: i32) -> (i32, i32) {
    %c0_i32 = arith.constant 0 : i32
    %c0_i32_0 = arith.constant 0 : i32
    return %arg0, %c0_i32 : i32, i32
  }
  func.func @transform_1(%arg0: i32) -> (i32, i32) {
    %c0_i32 = arith.constant 0 : i32
    %c0_i32_0 = arith.constant 0 : i32
    %c0_i32_1 = arith.constant 0 : i32
    return %c0_i32, %c0_i32_0 : i32, i32
  }
  func.func @transform_2(%arg0: i32) -> (i32, i32) {
    %c0_i32 = arith.constant 0 : i32
    %c0_i32_0 = arith.constant 0 : i32
    %c0_i32_1 = arith.constant 0 : i32
    return %c0_i32, %c0_i32_0 : i32, i32
  }
  func.func @transform_3(%arg0: i32) -> (i32, i32) {
    %c0_i32 = arith.constant 0 : i32
    %c0_i32_0 = arith.constant 0 : i32
    %c0_i32_1 = arith.constant 0 : i32
    return %c0_i32, %c0_i32_0 : i32, i32
  }
  func.func @transform_4(%arg0: i32) -> (i32, i32) {
    %c0_i32 = arith.constant 0 : i32
    %c0_i32_0 = arith.constant 0 : i32
    %c0_i32_1 = arith.constant 0 : i32
    return %c0_i32, %c0_i32_0 : i32, i32
  }
  func.func @transform_5(%arg0: i32) -> (i32, i32) {
    %c0_i32 = arith.constant 0 : i32
    %c0_i32_0 = arith.constant 0 : i32
    return %arg0, %c0_i32 : i32, i32
  }
}

</mosaic_0001>

<llo_original>
// kernel: tpu_custom_call.1
$region0: #{tpu_custom_call.1}
  #allocation0 [shape = 'u32[]', space=smem, size = 0x4, offset = 0x4, fixed_abs, tag = 'smem constant byte address 0x4 - core index']
  #allocation1 [shape = 'u32[144,128]{1,0:T(1,128)}', space=vmem, size = 0x12000, scoped, tag = 'internal scratch']
  %s0 = inlined_call_operand.hbm [shape: bf16[16,256], index: 0, kind: input, shape index: {}]
  %s1 = inlined_call_operand.hbm [shape: bf16[256,128], index: 1, kind: input, shape index: {}]
  %s2 = inlined_call_operand.vmem [shape: f32[1,128], index: 2, kind: input, shape index: {}]
  %s3 = inlined_call_operand.hbm [shape: bf16[128,256], index: 3, kind: input, shape index: {}]
  %s4 = inlined_call_operand.vmem [shape: f32[1,256], index: 4, kind: input, shape index: {}]
  %s5 = inlined_call_operand.hbm [shape: f32[16,256], index: 5, kind: output, shape index: {}]
  %s6 = sld [smem:[#allocation0]]
  $region65: #{tpu_custom_call.1} parent=0
    _
  %s8 = ssub.s32 1, %s6
  %s9 = scalar_select 0, %s8, %s6
  $region1: #{tpu_custom_call.1} parent=0
    #allocation2 [shape = 'u8[8192]{0}', space=vmem, size = 0x2000, scoped, tag = 'input window, operand 0']
    #allocation3 [shape = 's32[2]{0}', space=sflag, size = 0x8, scoped, tag = 'scoped memory for tpu_custom_call.1']
    #allocation4 [shape = 's32[2]{0}', space=sflag, size = 0x8, scoped, tag = 'scoped memory for tpu_custom_call.1']
    #allocation5 [shape = 'u8[65536]{0}', space=vmem, size = 0x10000, scoped, tag = 'input window, operand 1, single buffered']
    #allocation6 [shape = 's32[1]{0}', space=sflag, size = 0x4, scoped, tag = 'scoped memory for tpu_custom_call.1']
    #allocation7 [shape = 'u8[65536]{0}', space=vmem, size = 0x10000, scoped, tag = 'input window, operand 3, single buffered']
    #allocation8 [shape = 'u8[16384]{0}', space=vmem, size = 0x4000, scoped, tag = 'output window, operand 0']
    %10 = vsyncpa [#allocation3], 0
    %s11 = scalar_lea.sflag [#allocation3], 1
    %12 = vsyncpa %s11, 0
    %13 = vsyncpa [#allocation6], 0
    %14 = vsyncpa [#allocation4], 0
    %s15 = scalar_lea.sflag [#allocation4], 1
    %16 = vsyncpa %s15, 0
    loop: start=0, step=1, limit=4
    $region2: #{tpu_custom_call.1} parent=1 // loop_pre_header
      _
    $region3: #{tpu_custom_call.1} parent=1 // loop_header
      %s18 = sphi 0, %s22
      %p19 = scmp.ge.s32.totalorder %s18, 4
      %s28 = sphi 0, %s30
      %s31 = sphi 0, %s28
      %s32 = sphi 0, %s31
      %s48 = sphi 0, %s32
      %s52 = sphi 0, %s52
      %s54 = sphi 0, %s52
      %s55 = sphi 0, %s54
      %s69 = sphi 0, %s55
      %s73 = sphi 0, %s73
      %s75 = sphi 0, %s73
      %s76 = sphi 0, %s75
      %s90 = sphi 0, %s76
      %s94 = sphi 0, %s94
      %s96 = sphi 0, %s94
      %s97 = sphi 0, %s96
      %s111 = sphi 0, %s97
      %s115 = sphi 0, %s115
      %s117 = sphi 0, %s115
      %s118 = sphi 0, %s117
      %s132 = sphi 0, %s118
      %s138 = sphi 0, %s140
      %s141 = sphi 0, %s138
      %s142 = sphi 0, %s141
      %s158 = sphi 0, %s142
    $region4: #{tpu_custom_call.1} parent=1 // loop_header_branch
      %21 = sbr.rel (%p19) target = $region8
    $region5: #{tpu_custom_call.1} parent=1 // loop_body
      %s23 = ssub.s32 %s18, 1
      %s24 = ssub.s32 %s18, 2
      %s25 = sadd.s32 %s18, 1
      %s26 = ssub.s32 %s18, %s25
      %p27 = scmp.eq.s32.totalorder %s26, 0
      %s29 = sadd.s32 %s28, 1
      %s30 = scalar_select %p27, %s28, %s29
      %p33 = pneg %p27
      %p34 = scmp.eq.s32.totalorder %s18, 1
      %p35 = por %p33, %p34
      %p36 = scmp.ne.s32.totalorder %s28, %s31
      %p37 = scmp.eq.s32.totalorder %s18, 0
      %p38 = por %p36, %p37
      %p39 = scmp.ne.s32.totalorder %s28, %s31
      %p40 = scmp.eq.s32.totalorder %s23, 1
      %p41 = por %p39, %p40
      %p42 = scmp.ne.s32.totalorder %s31, %s32
      %p43 = scmp.eq.s32.totalorder %s23, 0
      %p44 = por %p42, %p43
      %p45 = scmp.ne.s32.totalorder %s31, %s32
      %p46 = scmp.eq.s32.totalorder %s24, 1
      %p47 = por %p45, %p46
      %p49 = scmp.ne.s32.totalorder %s32, %s48
      %p50 = scmp.eq.s32.totalorder %s24, 0
      %p51 = por %p49, %p50
      %s53 = sadd.s32 %s52, 1
      %p56 = scmp.eq.s32.totalorder %s18, 1
      %p57 = scmp.ne.s32.totalorder %s52, %s54
      %p58 = scmp.eq.s32.totalorder %s18, 0
      %p59 = por %p57, %p58
      %p60 = scmp.ne.s32.totalorder %s52, %s54
      %p61 = scmp.eq.s32.totalorder %s23, 1
      %p62 = por %p60, %p61
      %p63 = scmp.ne.s32.totalorder %s54, %s55
      %p64 = scmp.eq.s32.totalorder %s23, 0
      %p65 = por %p63, %p64
      %p66 = scmp.ne.s32.totalorder %s54, %s55
      %p67 = scmp.eq.s32.totalorder %s24, 1
      %p68 = por %p66, %p67
      %p70 = scmp.ne.s32.totalorder %s55, %s69
      %p71 = scmp.eq.s32.totalorder %s24, 0
      %p72 = por %p70, %p71
      %s74 = sadd.s32 %s73, 1
      %p77 = scmp.eq.s32.totalorder %s18, 1
      %p78 = scmp.ne.s32.totalorder %s73, %s75
      %p79 = scmp.eq.s32.totalorder %s18, 0
      %p80 = por %p78, %p79
      %p81 = scmp.ne.s32.totalorder %s73, %s75
      %p82 = scmp.eq.s32.totalorder %s23, 1
      %p83 = por %p81, %p82
      %p84 = scmp.ne.s32.totalorder %s75, %s76
      %p85 = scmp.eq.s32.totalorder %s23, 0
      %p86 = por %p84, %p85
      %p87 = scmp.ne.s32.totalorder %s75, %s76
      %p88 = scmp.eq.s32.totalorder %s24, 1
      %p89 = por %p87, %p88
      %p91 = scmp.ne.s32.totalorder %s76, %s90
      %p92 = scmp.eq.s32.totalorder %s24, 0
      %p93 = por %p91, %p92
      %s95 = sadd.s32 %s94, 1
      %p98 = scmp.eq.s32.totalorder %s18, 1
      %p99 = scmp.ne.s32.totalorder %s94, %s96
      %p100 = scmp.eq.s32.totalorder %s18, 0
      %p101 = por %p99, %p100
      %p102 = scmp.ne.s32.totalorder %s94, %s96
      %p103 = scmp.eq.s32.totalorder %s23, 1
      %p104 = por %p102, %p103
      %p105 = scmp.ne.s32.totalorder %s96, %s97
      %p106 = scmp.eq.s32.totalorder %s23, 0
      %p107 = por %p105, %p106
      %p108 = scmp.ne.s32.totalorder %s96, %s97
      %p109 = scmp.eq.s32.totalorder %s24, 1
      %p110 = por %p108, %p109
      %p112 = scmp.ne.s32.totalorder %s97, %s111
      %p113 = scmp.eq.s32.totalorder %s24, 0
      %p114 = por %p112, %p113
      %s116 = sadd.s32 %s115, 1
      %p119 = scmp.eq.s32.totalorder %s18, 1
      %p120 = scmp.ne.s32.totalorder %s115, %s117
      %p121 = scmp.eq.s32.totalorder %s18, 0
      %p122 = por %p120, %p121
      %p123 = scmp.ne.s32.totalorder %s115, %s117
      %p124 = scmp.eq.s32.totalorder %s23, 1
      %p125 = por %p123, %p124
      %p126 = scmp.ne.s32.totalorder %s117, %s118
      %p127 = scmp.eq.s32.totalorder %s23, 0
      %p128 = por %p126, %p127
      %p129 = scmp.ne.s32.totalorder %s117, %s118
      %p130 = scmp.eq.s32.totalorder %s24, 1
      %p131 = por %p129, %p130
      %p133 = scmp.ne.s32.totalorder %s118, %s132
      %p134 = scmp.eq.s32.totalorder %s24, 0
      %p135 = por %p133, %p134
      %s136 = ssub.s32 %s18, %s25
      %p137 = scmp.eq.s32.totalorder %s136, 0
      %s139 = sadd.s32 %s138, 1
      %s140 = scalar_select %p137, %s138, %s139
      %p143 = pneg %p137
      %p144 = scmp.eq.s32.totalorder %s18, 1
      %p145 = por %p143, %p144
      %p146 = scmp.ne.s32.totalorder %s138, %s141
      %p147 = scmp.eq.s32.totalorder %s18, 0
      %p148 = por %p146, %p147
      %p149 = scmp.ne.s32.totalorder %s138, %s141
      %p150 = scmp.eq.s32.totalorder %s23, 1
      %p151 = por %p149, %p150
      %p152 = scmp.ne.s32.totalorder %s141, %s142
      %p153 = scmp.eq.s32.totalorder %s23, 0
      %p154 = por %p152, %p153
      %p155 = scmp.ne.s32.totalorder %s141, %s142
      %p156 = scmp.eq.s32.totalorder %s24, 1
      %p157 = por %p155, %p156
      %p159 = scmp.ne.s32.totalorder %s142, %s158
      %p160 = scmp.eq.s32.totalorder %s24, 0
      %p161 = por %p159, %p160
      %p162 = scmp.le.s32.totalorder 1, %s18
      %p163 = scmp.lt.s32.totalorder %s18, 3
      %p164 = pnand %p162, %p163
      %p165 = pneg %p164
      // Predicated region
      $region9: #{tpu_custom_call.1} parent=5 // pred_check
        _
      $region10: #{tpu_custom_call.1} parent=5 // pred_check_branch
        %167 = sbr.rel (%p164) target = $region12
      $region11: #{tpu_custom_call.1} parent=5 // pred_region
        %s168 = ssub.s32 %s18, 1
        // Predicated region
        $region13: #{tpu_custom_call.1} parent=11 // pred_check
          %p169 = pneg %p65
        $region14: #{tpu_custom_call.1} parent=11 // pred_check_branch
          %171 = sbr.rel (%p169) target = $region16
        $region15: #{tpu_custom_call.1} parent=11 // pred_region
          %s173 = ssub.s32 2048, 2048
          %174 = vsyncadd [#allocation6], %s173
          %s175 = sshll.u32 [#allocation5], 4
          %s176 = int_to_ptr.vmem [resolvable:$true] %s175
          %181 = dma.hbm_to_vmem [thread:$0]  %s1, 2048, %s176, [#allocation6], 64, 64, 4
        $region16: #{tpu_custom_call.1} parent=11 // pred_fallthru
          _
        // Predicated region
        $region17: #{tpu_custom_call.1} parent=11 // pred_check
          %p182 = pneg %p86
        $region18: #{tpu_custom_call.1} parent=11 // pred_check_branch
          %184 = sbr.rel (%p182) target = $region20
        $region19: #{tpu_custom_call.1} parent=11 // pred_region
          _
        $region20: #{tpu_custom_call.1} parent=11 // pred_fallthru
          _
        // Predicated region
        $region21: #{tpu_custom_call.1} parent=11 // pred_check
          %p185 = pneg %p107
        $region22: #{tpu_custom_call.1} parent=11 // pred_check_branch
          %187 = sbr.rel (%p185) target = $region24
        $region23: #{tpu_custom_call.1} parent=11 // pred_region
          %s189 = ssub.s32 2048, 2048
          %190 = vsyncadd [#allocation6], %s189
          %s191 = sshll.u32 [#allocation7], 4
          %s192 = int_to_ptr.vmem [resolvable:$true] %s191
          %197 = dma.hbm_to_vmem [thread:$0]  %s3, 2048, %s192, [#allocation6], 128, 128, 8
        $region24: #{tpu_custom_call.1} parent=11 // pred_fallthru
          _
        // Predicated region
        $region25: #{tpu_custom_call.1} parent=11 // pred_check
          %p198 = pneg %p128
        $region26: #{tpu_custom_call.1} parent=11 // pred_check_branch
          %200 = sbr.rel (%p198) target = $region28
        $region27: #{tpu_custom_call.1} parent=11 // pred_region
          _
        $region28: #{tpu_custom_call.1} parent=11 // pred_fallthru
          _
      $region12: #{tpu_custom_call.1} parent=5 // pred_fallthru
        _
      %p201 = scmp.lt.s32.totalorder %s18, 2
      // Predicated region
      $region29: #{tpu_custom_call.1} parent=5 // pred_check
        %p202 = pneg %p201
      $region30: #{tpu_custom_call.1} parent=5 // pred_check_branch
        %204 = sbr.rel (%p202) target = $region32
      $region31: #{tpu_custom_call.1} parent=5 // pred_region
        // Predicated region
        $region33: #{tpu_custom_call.1} parent=31 // pred_check
          %p205 = pneg %p38
        $region34: #{tpu_custom_call.1} parent=31 // pred_check_branch
          %207 = sbr.rel (%p205) target = $region36
        $region35: #{tpu_custom_call.1} parent=31 // pred_region
          %s208 = sand.u32 %s28, 1
          %s209 = scalar_lea.sflag [#allocation3], %s208
          %s210 = sand.u32 %s28, 1
          %s211 = smul.addr %s210, 8
          %s212 = scalar_lea.vmem [#allocation2], %s211
          %s214 = ssub.s32 128, 128
          %215 = vsyncadd %s209, %s214
          %s216 = smul.addr %s18, 2
          %s217 = smul.addr %s216, 64
          %s218 = scalar_lea.hbm %s0, %s217
          %s220 = sshll.u32 %s212, 4
          %s221 = int_to_ptr.vmem [resolvable:$true] %s220
          %223 = dma.hbm_to_vmem [thread:$0]  %s218, 128, %s221, %s209
        $region36: #{tpu_custom_call.1} parent=31 // pred_fallthru
          _
      $region32: #{tpu_custom_call.1} parent=5 // pred_fallthru
        _
      %p224 = scmp.le.s32.totalorder 1, %s18
      %p225 = scmp.lt.s32.totalorder %s18, 3
      %p226 = pnand %p224, %p225
      %p227 = pneg %p226
      // Predicated region
      $region37: #{tpu_custom_call.1} parent=5 // pred_check
        _
      $region38: #{tpu_custom_call.1} parent=5 // pred_check_branch
        %229 = sbr.rel (%p226) target = $region40
      $region39: #{tpu_custom_call.1} parent=5 // pred_region
        %s230 = ssub.s32 %s18, 1
        %s231 = sand.u32 %s31, 1
        %s232 = scalar_lea.sflag [#allocation3], %s231
        %s233 = sand.u32 %s31, 1
        %s234 = smul.addr %s233, 8
        %s235 = scalar_lea.vmem [#allocation2], %s234
        // Predicated region
        $region41: #{tpu_custom_call.1} parent=39 // pred_check
          %p236 = pneg %p44
        $region42: #{tpu_custom_call.1} parent=39 // pred_check_branch
          %238 = sbr.rel (%p236) target = $region44
        $region43: #{tpu_custom_call.1} parent=39 // pred_region
          %239 = dma.done %s232, 128
        $region44: #{tpu_custom_call.1} parent=39 // pred_fallthru
          _
        // Predicated region
        $region45: #{tpu_custom_call.1} parent=39 // pred_check
          %p240 = pneg %p65
        $region46: #{tpu_custom_call.1} parent=39 // pred_check_branch
          %242 = sbr.rel (%p240) target = $region48
        $region47: #{tpu_custom_call.1} parent=39 // pred_region
          %243 = dma.done [#allocation6], 2048
        $region48: #{tpu_custom_call.1} parent=39 // pred_fallthru
          _
        // Predicated region
        $region49: #{tpu_custom_call.1} parent=39 // pred_check
          %p244 = pneg %p107
        $region50: #{tpu_custom_call.1} parent=39 // pred_check_branch
          %246 = sbr.rel (%p244) target = $region52
        $region51: #{tpu_custom_call.1} parent=39 // pred_region
          %247 = dma.done [#allocation6], 2048
        $region52: #{tpu_custom_call.1} parent=39 // pred_fallthru
          _
        %s248 = sand.u32 %s31, 1
        %s249 = scalar_lea.sflag [#allocation3], %s248
        %s250 = sand.u32 %s31, 1
        %s251 = smul.addr %s250, 8
        %s252 = scalar_lea.vmem [#allocation2], %s251
        %p253 = pneg %p44
        %p254 = pneg %p41
        %p255 = pneg %p65
        %p256 = pneg %p62
        %p257 = pneg %p86
        %p258 = pneg %p83
        %p259 = pneg %p107
        %p260 = pneg %p104
        %p261 = pneg %p128
        %p262 = pneg %p125
        %p263 = pneg %p154
        %p264 = pneg %p151
        %s265 = sand.u32 %s141, 1
        %s266 = scalar_lea.sflag [#allocation4], %s265
        %s267 = sand.u32 %s141, 1
        %s268 = smul.addr %s267, 16
        %s269 = scalar_lea.vmem [#allocation8], %s268
        %v271 = vld [vmem:[%s235] sm:$0xff]
        %v272 = vld [vmem:[#allocation5] sm:$0xf]
        %v273 = vld [vmem:[#allocation5 + $0x4] sm:$0xf]
        %v274 = vld [vmem:[#allocation5 + $0x8] sm:$0xf]
        %v275 = vld [vmem:[#allocation5 + $0xc] sm:$0xf]
        %v276 = vld [vmem:[#allocation5 + $0x10] sm:$0xf]
        %v277 = vld [vmem:[#allocation5 + $0x14] sm:$0xf]
        %v278 = vld [vmem:[#allocation5 + $0x18] sm:$0xf]
        %v279 = vld [vmem:[#allocation5 + $0x1c] sm:$0xf]
        %v280 = vld [vmem:[#allocation5 + $0x20] sm:$0xf]
        %v281 = vld [vmem:[#allocation5 + $0x24] sm:$0xf]
        %v282 = vld [vmem:[#allocation5 + $0x28] sm:$0xf]
        %v283 = vld [vmem:[#allocation5 + $0x2c] sm:$0xf]
        %v284 = vld [vmem:[#allocation5 + $0x30] sm:$0xf]
        %v285 = vld [vmem:[#allocation5 + $0x34] sm:$0xf]
        %v286 = vld [vmem:[#allocation5 + $0x38] sm:$0xf]
        %v287 = vld [vmem:[#allocation5 + $0x3c] sm:$0xf]
        %v288 = vld [vmem:[#allocation5 + $0x40] sm:$0xf]
        %v289 = vld [vmem:[#allocation5 + $0x44] sm:$0xf]
        %v290 = vld [vmem:[#allocation5 + $0x48] sm:$0xf]
        %v291 = vld [vmem:[#allocation5 + $0x4c] sm:$0xf]
        %v292 = vld [vmem:[#allocation5 + $0x50] sm:$0xf]
        %v293 = vld [vmem:[#allocation5 + $0x54] sm:$0xf]
        %v294 = vld [vmem:[#allocation5 + $0x58] sm:$0xf]
        %v295 = vld [vmem:[#allocation5 + $0x5c] sm:$0xf]
        %v296 = vld [vmem:[#allocation5 + $0x60] sm:$0xf]
        %v297 = vld [vmem:[#allocation5 + $0x64] sm:$0xf]
        %v298 = vld [vmem:[#allocation5 + $0x68] sm:$0xf]
        %v299 = vld [vmem:[#allocation5 + $0x6c] sm:$0xf]
        %v300 = vld [vmem:[#allocation5 + $0x70] sm:$0xf]
        %v301 = vld [vmem:[#allocation5 + $0x74] sm:$0xf]
        %v302 = vld [vmem:[#allocation5 + $0x78] sm:$0xf]
        %v303 = vld [vmem:[#allocation5 + $0x7c] sm:$0xf]
        %v304 = vld [vmem:[%s2] sm:$0x1]
        %v306 = vlaneseq
        %v307 = vshrl.u32 %v306, 7
        %v308 = vsub.s32 0, %v307
        %v309 = vrot.slane %v304, %v308
        %v312 = vunpack.c.l.b16 %v271
        %v313 = vunpack.c.h.b16 %v271
        %v314 = vpack.c.b16 %v312, %v312
        %v315 = vpack.c.b16 %v313, %v313
        %v350 = vunpack.c.l.b16 %v272
        %v351 = vunpack.c.l.b16 %v273
        %v352 = vunpack.c.l.b16 %v274
        %v353 = vunpack.c.l.b16 %v275
        %v354 = vunpack.c.l.b16 %v276
        %v355 = vunpack.c.l.b16 %v277
        %v356 = vunpack.c.l.b16 %v278
        %v357 = vunpack.c.l.b16 %v279
        %v358 = vunpack.c.l.b16 %v280
        %v359 = vunpack.c.l.b16 %v281
        %v360 = vunpack.c.l.b16 %v282
        %v361 = vunpack.c.l.b16 %v283
        %v362 = vunpack.c.l.b16 %v284
        %v363 = vunpack.c.l.b16 %v285
        %v364 = vunpack.c.l.b16 %v286
        %v365 = vunpack.c.l.b16 %v287
        %v366 = vunpack.c.l.b16 %v288
        %v367 = vunpack.c.l.b16 %v289
        %v368 = vunpack.c.l.b16 %v290
        %v369 = vunpack.c.l.b16 %v291
        %v370 = vunpack.c.l.b16 %v292
        %v371 = vunpack.c.l.b16 %v293
        %v372 = vunpack.c.l.b16 %v294
        %v373 = vunpack.c.l.b16 %v295
        %v374 = vunpack.c.l.b16 %v296
        %v375 = vunpack.c.l.b16 %v297
        %v376 = vunpack.c.l.b16 %v298
        %v377 = vunpack.c.l.b16 %v299
        %v378 = vunpack.c.l.b16 %v300
        %v379 = vunpack.c.l.b16 %v301
        %v380 = vunpack.c.l.b16 %v302
        %v381 = vunpack.c.l.b16 %v303
        %v382 = vpack.c.b16 %v351, %v350
        %v383 = vpack.c.b16 %v353, %v352
        %v384 = vpack.c.b16 %v355, %v354
        %v385 = vpack.c.b16 %v357, %v356
        %v386 = vpack.c.b16 %v359, %v358
        %v387 = vpack.c.b16 %v361, %v360
        %v388 = vpack.c.b16 %v363, %v362
        %v389 = vpack.c.b16 %v365, %v364
        %v390 = vpack.c.b16 %v367, %v366
        %v391 = vpack.c.b16 %v369, %v368
        %v392 = vpack.c.b16 %v371, %v370
        %v393 = vpack.c.b16 %v373, %v372
        %v394 = vpack.c.b16 %v375, %v374
        %v395 = vpack.c.b16 %v377, %v376
        %v396 = vpack.c.b16 %v379, %v378
        %v397 = vpack.c.b16 %v381, %v380
        %414 = vmatprep.subr.bf16.mxu0 0
        %415 = vmatpush1.bf16.msra.mxu0 %v382
        %416 = vmatprep.subr.bf16.mxu0 0
        %417 = vmatpush1.bf16.msra.mxu0 %v383
        %418 = vmatprep.subr.bf16.mxu0 0
        %419 = vmatpush1.bf16.msra.mxu0 %v384
        %420 = vmatprep.subr.bf16.mxu0 0
        %421 = vmatpush1.bf16.msra.mxu0 %v385
        %422 = vmatprep.subr.bf16.mxu0 0
        %423 = vmatpush1.bf16.msra.mxu0 %v386
        %424 = vmatprep.subr.bf16.mxu0 0
        %425 = vmatpush1.bf16.msra.mxu0 %v387
        %426 = vmatprep.subr.bf16.mxu0 0
        %427 = vmatpush1.bf16.msra.mxu0 %v388
        %428 = vmatprep.subr.bf16.mxu0 0
        %429 = vmatpush1.bf16.msra.mxu0 %v389
        %430 = vmatprep.subr.bf16.mxu0 0
        %431 = vmatpush1.bf16.msra.mxu0 %v390
        %432 = vmatprep.subr.bf16.mxu0 0
        %433 = vmatpush1.bf16.msra.mxu0 %v391
        %434 = vmatprep.subr.bf16.mxu0 0
        %435 = vmatpush1.bf16.msra.mxu0 %v392
        %436 = vmatprep.subr.bf16.mxu0 0
        %437 = vmatpush1.bf16.msra.mxu0 %v393
        %438 = vmatprep.subr.bf16.mxu0 0
        %439 = vmatpush1.bf16.msra.mxu0 %v394
        %440 = vmatprep.subr.bf16.mxu0 0
        %441 = vmatpush1.bf16.msra.mxu0 %v395
        %442 = vmatprep.subr.bf16.mxu0 0
        %443 = vmatpush1.bf16.msra.mxu0 %v396
        %444 = vmatprep.subr.bf16.mxu0 0
        %445 = vmatpush1.bf16.msra.mxu0 %v397
        %446 = vmatprep.mubr.bf16.mxu0 %v315
        %447 = vmatmul.mubr.bf16.gmra.mrb[0].mxu0 %v314
        %v448 = vpop.f32.mrb[0].mxu0
        %v449 = vadd.f32 %v309, %v448
        %v450 = vpop.f32.mrb[0].mxu0
        %v451 = vpop.f32.mrb[0].mxu0
        %v452 = vpop.f32.mrb[0].mxu0
        %453 = vdwg.mxu0
        %v454 = vmax.f32 %v449, 0.0
        %v455 = vpack.c.bf16 %v454, %v454
        %v456 = vld [vmem:[#allocation7] sm:$0xff]
        %v457 = vld [vmem:[#allocation7 + $0x8] sm:$0xff]
        %v458 = vld [vmem:[#allocation7 + $0x10] sm:$0xff]
        %v459 = vld [vmem:[#allocation7 + $0x18] sm:$0xff]
        %v460 = vld [vmem:[#allocation7 + $0x20] sm:$0xff]
        %v461 = vld [vmem:[#allocation7 + $0x28] sm:$0xff]
        %v462 = vld [vmem:[#allocation7 + $0x30] sm:$0xff]
        %v463 = vld [vmem:[#allocation7 + $0x38] sm:$0xff]
        %v464 = vld [vmem:[#allocation7 + $0x40] sm:$0xff]
        %v465 = vld [vmem:[#allocation7 + $0x48] sm:$0xff]
        %v466 = vld [vmem:[#allocation7 + $0x50] sm:$0xff]
        %v467 = vld [vmem:[#allocation7 + $0x58] sm:$0xff]
        %v468 = vld [vmem:[#allocation7 + $0x60] sm:$0xff]
        %v469 = vld [vmem:[#allocation7 + $0x68] sm:$0xff]
        %v470 = vld [vmem:[#allocation7 + $0x70] sm:$0xff]
        %v471 = vld [vmem:[#allocation7 + $0x78] sm:$0xff]
        %v472 = vld [vmem:[%s4] sm:$0x3]
        %v474 = vlaneseq
        %v475 = vshrl.u32 %v474, 7
        %v476 = vsub.s32 0, %v475
        %v477 = vrot.slane %v472, %v476
        %v478 = vlaneseq
        %v479 = vshrl.u32 %v478, 7
        %v480 = vsub.s32 1, %v479
        %v481 = vrot.slane %v472, %v480
        %v500 = vunpack.c.l.b16 %v456
        %v501 = vunpack.c.h.b16 %v456
        %v502 = vunpack.c.l.b16 %v457
        %v503 = vunpack.c.h.b16 %v457
        %v504 = vunpack.c.l.b16 %v458
        %v505 = vunpack.c.h.b16 %v458
        %v506 = vunpack.c.l.b16 %v459
        %v507 = vunpack.c.h.b16 %v459
        %v508 = vunpack.c.l.b16 %v460
        %v509 = vunpack.c.h.b16 %v460
        %v510 = vunpack.c.l.b16 %v461
        %v511 = vunpack.c.h.b16 %v461
        %v512 = vunpack.c.l.b16 %v462
        %v513 = vunpack.c.h.b16 %v462
        %v514 = vunpack.c.l.b16 %v463
        %v515 = vunpack.c.h.b16 %v463
        %v516 = vunpack.c.l.b16 %v464
        %v517 = vunpack.c.h.b16 %v464
        %v518 = vunpack.c.l.b16 %v465
        %v519 = vunpack.c.h.b16 %v465
        %v520 = vunpack.c.l.b16 %v466
        %v521 = vunpack.c.h.b16 %v466
        %v522 = vunpack.c.l.b16 %v467
        %v523 = vunpack.c.h.b16 %v467
        %v524 = vunpack.c.l.b16 %v468
        %v525 = vunpack.c.h.b16 %v468
        %v526 = vunpack.c.l.b16 %v469
        %v527 = vunpack.c.h.b16 %v469
        %v528 = vunpack.c.l.b16 %v470
        %v529 = vunpack.c.h.b16 %v470
        %v530 = vunpack.c.l.b16 %v471
        %v531 = vunpack.c.h.b16 %v471
        %v532 = vpack.c.b16 %v502, %v500
        %v533 = vpack.c.b16 %v503, %v501
        %v534 = vpack.c.b16 %v506, %v504
        %v535 = vpack.c.b16 %v507, %v505
        %v536 = vpack.c.b16 %v510, %v508
        %v537 = vpack.c.b16 %v511, %v509
        %v538 = vpack.c.b16 %v514, %v512
        %v539 = vpack.c.b16 %v515, %v513
        %v540 = vpack.c.b16 %v518, %v516
        %v541 = vpack.c.b16 %v519, %v517
        %v542 = vpack.c.b16 %v522, %v520
        %v543 = vpack.c.b16 %v523, %v521
        %v544 = vpack.c.b16 %v526, %v524
        %v545 = vpack.c.b16 %v527, %v525
        %v546 = vpack.c.b16 %v530, %v528
        %v547 = vpack.c.b16 %v531, %v529
        %564 = vmatprep.subr.bf16.mxu0 %v533
        %565 = vmatpush1.bf16.msra.mxu0 %v532
        %566 = vmatprep.subr.bf16.mxu0 %v535
        %567 = vmatpush1.bf16.msra.mxu0 %v534
        %568 = vmatprep.subr.bf16.mxu0 %v537
        %569 = vmatpush1.bf16.msra.mxu0 %v536
        %570 = vmatprep.subr.bf16.mxu0 %v539
        %571 = vmatpush1.bf16.msra.mxu0 %v538
        %572 = vmatprep.subr.bf16.mxu0 %v541
        %573 = vmatpush1.bf16.msra.mxu0 %v540
        %574 = vmatprep.subr.bf16.mxu0 %v543
        %575 = vmatpush1.bf16.msra.mxu0 %v542
        %576 = vmatprep.subr.bf16.mxu0 %v545
        %577 = vmatpush1.bf16.msra.mxu0 %v544
        %578 = vmatprep.subr.bf16.mxu0 %v547
        %579 = vmatpush1.bf16.msra.mxu0 %v546
        %580 = vmatprep.subr.bf16.mxu0 0
        %581 = vmatpush1.bf16.msra.mxu0 0
        %582 = vmatprep.subr.bf16.mxu0 0
        %583 = vmatpush1.bf16.msra.mxu0 0
        %584 = vmatprep.subr.bf16.mxu0 0
        %585 = vmatpush1.bf16.msra.mxu0 0
        %586 = vmatprep.subr.bf16.mxu0 0
        %587 = vmatpush1.bf16.msra.mxu0 0
        %588 = vmatprep.subr.bf16.mxu0 0
        %589 = vmatpush1.bf16.msra.mxu0 0
        %590 = vmatprep.subr.bf16.mxu0 0
        %591 = vmatpush1.bf16.msra.mxu0 0
        %592 = vmatprep.subr.bf16.mxu0 0
        %593 = vmatpush1.bf16.msra.mxu0 0
        %594 = vmatprep.subr.bf16.mxu0 0
        %595 = vmatpush1.bf16.msra.mxu0 0
        %596 = vmatprep.mubr.bf16.mxu0 0
        %597 = vmatmul.mubr.bf16.gmra.mrb[0].mxu0 %v455
        %v598 = vpop.f32.mrb[0].mxu0
        %v599 = vadd.f32 %v477, %v598
        %v600 = vpop.f32.mrb[0].mxu0
        %v601 = vadd.f32 %v481, %v600
        %v602 = vpop.f32.mrb[0].mxu0
        %v603 = vpop.f32.mrb[0].mxu0
        %604 = vdwg.mxu0
        %605 = vst [vmem:[%s269] sm:$0xff] %v599
        %606 = vst [vmem:[%s269 + $0x8] sm:$0xff] %v601
        %s607 = sand.u32 %s141, 1
        %s608 = scalar_lea.sflag [#allocation4], %s607
        %s609 = sand.u32 %s141, 1
        %s610 = smul.addr %s609, 16
        %s611 = scalar_lea.vmem [#allocation8], %s610
        // Predicated region
        $region53: #{tpu_custom_call.1} parent=39 // pred_check
          %p612 = pneg %p151
        $region54: #{tpu_custom_call.1} parent=39 // pred_check_branch
          %614 = sbr.rel (%p612) target = $region56
        $region55: #{tpu_custom_call.1} parent=39 // pred_region
          %s616 = ssub.s32 256, 256
          %617 = vsyncadd %s608, %s616
          %s618 = smul.addr %s23, 2
          %s619 = smul.addr %s618, 128
          %s620 = scalar_lea.hbm %s5, %s619
          %s622 = sshll.u32 %s611, 4
          %s623 = int_to_ptr.vmem [resolvable:$true] %s622
          %625 = dma.vmem_to_hbm [thread:$0]  %s623, 256, %s620, %s608
        $region56: #{tpu_custom_call.1} parent=39 // pred_fallthru
          _
      $region40: #{tpu_custom_call.1} parent=5 // pred_fallthru
        _
      %p626 = scmp.le.s32.totalorder 2, %s18
      // Predicated region
      $region57: #{tpu_custom_call.1} parent=5 // pred_check
        %p627 = pneg %p626
      $region58: #{tpu_custom_call.1} parent=5 // pred_check_branch
        %629 = sbr.rel (%p627) target = $region60
      $region59: #{tpu_custom_call.1} parent=5 // pred_region
        %s630 = ssub.s32 %s18, 2
        // Predicated region
        $region61: #{tpu_custom_call.1} parent=59 // pred_check
          %p631 = pneg %p157
        $region62: #{tpu_custom_call.1} parent=59 // pred_check_branch
          %633 = sbr.rel (%p631) target = $region64
        $region63: #{tpu_custom_call.1} parent=59 // pred_region
          %s634 = sand.u32 %s142, 1
          %s635 = scalar_lea.sflag [#allocation4], %s634
          %s636 = sand.u32 %s142, 1
          %s637 = smul.addr %s636, 16
          %s638 = scalar_lea.vmem [#allocation8], %s637
          %639 = dma.done %s635, 256
        $region64: #{tpu_custom_call.1} parent=59 // pred_fallthru
          _
      $region60: #{tpu_custom_call.1} parent=5 // pred_fallthru
        _
    $region6: #{tpu_custom_call.1} parent=1 // loop_footer
      %s22 = sadd.s32 1, %s18
    $region7: #{tpu_custom_call.1} parent=1 // loop_footer_branch
      %17 = sbr.rel target = $region3
    $region8: #{tpu_custom_call.1} parent=1 // loop_exit
      _
    %640 = vsyncpa [#allocation3], 1
    %s641 = scalar_lea.sflag [#allocation3], 1
    %642 = vsyncpa %s641, 1
    %643 = vsyncpa [#allocation6], 1
    %644 = vsyncpa [#allocation4], 1
    %s645 = scalar_lea.sflag [#allocation4], 1
    %646 = vsyncpa %s645, 1

// kernel: tpu_custom_call.1
$region0: #{tpu_custom_call.1}
  #allocation0 [shape = 'u32[]', space=smem, size = 0x4, offset = 0x4, fixed_abs, tag = 'smem constant byte address 0x4 - core index']
  #allocation1 [shape = 'u32[144,128]{1,0:T(1,128)}', space=vmem, size = 0x12000, scoped, tag = 'internal scratch']
  %s0 = inlined_call_operand.hbm [shape: bf16[16,256], index: 0, kind: input, shape index: {}]
  %s1 = inlined_call_operand.hbm [shape: bf16[256,128], index: 1, kind: input, shape index: {}]
  %s2 = inlined_call_operand.vmem [shape: f32[1,128], index: 2, kind: input, shape index: {}]
  %s3 = inlined_call_operand.hbm [shape: bf16[128,256], index: 3, kind: input, shape index: {}]
  %s4 = inlined_call_operand.vmem [shape: f32[1,256], index: 4, kind: input, shape index: {}]
  %s5 = inlined_call_operand.hbm [shape: f32[16,256], index: 5, kind: output, shape index: {}]
  %s6 = sld [smem:[#allocation0]]
  $region65: #{tpu_custom_call.1} parent=0
    _
  %s8 = ssub.s32 1, %s6
  %s9 = scalar_select 0, %s8, %s6
  $region1: #{tpu_custom_call.1} parent=0
    #allocation2 [shape = 'u8[8192]{0}', space=vmem, size = 0x2000, scoped, tag = 'input window, operand 0']
    #allocation3 [shape = 's32[2]{0}', space=sflag, size = 0x8, scoped, tag = 'scoped memory for tpu_custom_call.1']
    #allocation4 [shape = 's32[2]{0}', space=sflag, size = 0x8, scoped, tag = 'scoped memory for tpu_custom_call.1']
    #allocation5 [shape = 'u8[65536]{0}', space=vmem, size = 0x10000, scoped, tag = 'input window, operand 1, single buffered']
    #allocation6 [shape = 's32[1]{0}', space=sflag, size = 0x4, scoped, tag = 'scoped memory for tpu_custom_call.1']
    #allocation7 [shape = 'u8[65536]{0}', space=vmem, size = 0x10000, scoped, tag = 'input window, operand 3, single buffered']
    #allocation8 [shape = 'u8[16384]{0}', space=vmem, size = 0x4000, scoped, tag = 'output window, operand 0']
    %10 = vsyncpa [#allocation3], 0
    %s11 = scalar_lea.sflag [#allocation3], 1
    %12 = vsyncpa %s11, 0
    %13 = vsyncpa [#allocation6], 0
    %14 = vsyncpa [#allocation4], 0
    %s15 = scalar_lea.sflag [#allocation4], 1
    %16 = vsyncpa %s15, 0
    loop: start=0, step=1, limit=4
    $region2: #{tpu_custom_call.1} parent=1 // loop_pre_header
      _
    $region3: #{tpu_custom_call.1} parent=1 // loop_header
      %s18 = sphi 0, %s22
      %p19 = scmp.ge.s32.totalorder %s18, 4
      %s28 = sphi 0, %s30
      %s31 = sphi 0, %s28
      %s32 = sphi 0, %s31
      %s48 = sphi 0, %s32
      %s52 = sphi 0, %s52
      %s54 = sphi 0, %s52
      %s55 = sphi 0, %s54
      %s69 = sphi 0, %s55
      %s73 = sphi 0, %s73
      %s75 = sphi 0, %s73
      %s76 = sphi 0, %s75
      %s90 = sphi 0, %s76
      %s94 = sphi 0, %s94
      %s96 = sphi 0, %s94
      %s97 = sphi 0, %s96
      %s111 = sphi 0, %s97
      %s115 = sphi 0, %s115
      %s117 = sphi 0, %s115
      %s118 = sphi 0, %s117
      %s132 = sphi 0, %s118
      %s138 = sphi 0, %s140
      %s141 = sphi 0, %s138
      %s142 = sphi 0, %s141
      %s158 = sphi 0, %s142
    $region4: #{tpu_custom_call.1} parent=1 // loop_header_branch
      %21 = sbr.rel (%p19) target = $region8
    $region5: #{tpu_custom_call.1} parent=1 // loop_body
      %s23 = ssub.s32 %s18, 1
      %s24 = ssub.s32 %s18, 2
      %s25 = sadd.s32 %s18, 1
      %s26 = ssub.s32 %s18, %s25
      %p27 = scmp.eq.s32.totalorder %s26, 0
      %s29 = sadd.s32 %s28, 1
      %s30 = scalar_select %p27, %s28, %s29
      %p33 = pneg %p27
      %p34 = scmp.eq.s32.totalorder %s18, 1
      %p35 = por %p33, %p34
      %p36 = scmp.ne.s32.totalorder %s28, %s31
      %p37 = scmp.eq.s32.totalorder %s18, 0
      %p38 = por %p36, %p37
      %p39 = scmp.ne.s32.totalorder %s28, %s31
      %p40 = scmp.eq.s32.totalorder %s23, 1
      %p41 = por %p39, %p40
      %p42 = scmp.ne.s32.totalorder %s31, %s32
      %p43 = scmp.eq.s32.totalorder %s23, 0
      %p44 = por %p42, %p43
      %p45 = scmp.ne.s32.totalorder %s31, %s32
      %p46 = scmp.eq.s32.totalorder %s24, 1
      %p47 = por %p45, %p46
      %p49 = scmp.ne.s32.totalorder %s32, %s48
      %p50 = scmp.eq.s32.totalorder %s24, 0
      %p51 = por %p49, %p50
      %s53 = sadd.s32 %s52, 1
      %p56 = scmp.eq.s32.totalorder %s18, 1
      %p57 = scmp.ne.s32.totalorder %s52, %s54
      %p58 = scmp.eq.s32.totalorder %s18, 0
      %p59 = por %p57, %p58
      %p60 = scmp.ne.s32.totalorder %s52, %s54
      %p61 = scmp.eq.s32.totalorder %s23, 1
      %p62 = por %p60, %p61
      %p63 = scmp.ne.s32.totalorder %s54, %s55
      %p64 = scmp.eq.s32.totalorder %s23, 0
      %p65 = por %p63, %p64
      %p66 = scmp.ne.s32.totalorder %s54, %s55
      %p67 = scmp.eq.s32.totalorder %s24, 1
      %p68 = por %p66, %p67
      %p70 = scmp.ne.s32.totalorder %s55, %s69
      %p71 = scmp.eq.s32.totalorder %s24, 0
      %p72 = por %p70, %p71
      %s74 = sadd.s32 %s73, 1
      %p77 = scmp.eq.s32.totalorder %s18, 1
      %p78 = scmp.ne.s32.totalorder %s73, %s75
      %p79 = scmp.eq.s32.totalorder %s18, 0
      %p80 = por %p78, %p79
      %p81 = scmp.ne.s32.totalorder %s73, %s75
      %p82 = scmp.eq.s32.totalorder %s23, 1
      %p83 = por %p81, %p82
      %p84 = scmp.ne.s32.totalorder %s75, %s76
      %p85 = scmp.eq.s32.totalorder %s23, 0
      %p86 = por %p84, %p85
      %p87 = scmp.ne.s32.totalorder %s75, %s76
      %p88 = scmp.eq.s32.totalorder %s24, 1
      %p89 = por %p87, %p88
      %p91 = scmp.ne.s32.totalorder %s76, %s90
      %p92 = scmp.eq.s32.totalorder %s24, 0
      %p93 = por %p91, %p92
      %s95 = sadd.s32 %s94, 1
      %p98 = scmp.eq.s32.totalorder %s18, 1
      %p99 = scmp.ne.s32.totalorder %s94, %s96
      %p100 = scmp.eq.s32.totalorder %s18, 0
      %p101 = por %p99, %p100
      %p102 = scmp.ne.s32.totalorder %s94, %s96
      %p103 = scmp.eq.s32.totalorder %s23, 1
      %p104 = por %p102, %p103
      %p105 = scmp.ne.s32.totalorder %s96, %s97
      %p106 = scmp.eq.s32.totalorder %s23, 0
      %p107 = por %p105, %p106
      %p108 = scmp.ne.s32.totalorder %s96, %s97
      %p109 = scmp.eq.s32.totalorder %s24, 1
      %p110 = por %p108, %p109
      %p112 = scmp.ne.s32.totalorder %s97, %s111
      %p113 = scmp.eq.s32.totalorder %s24, 0
      %p114 = por %p112, %p113
      %s116 = sadd.s32 %s115, 1
      %p119 = scmp.eq.s32.totalorder %s18, 1
      %p120 = scmp.ne.s32.totalorder %s115, %s117
      %p121 = scmp.eq.s32.totalorder %s18, 0
      %p122 = por %p120, %p121
      %p123 = scmp.ne.s32.totalorder %s115, %s117
      %p124 = scmp.eq.s32.totalorder %s23, 1
      %p125 = por %p123, %p124
      %p126 = scmp.ne.s32.totalorder %s117, %s118
      %p127 = scmp.eq.s32.totalorder %s23, 0
      %p128 = por %p126, %p127
      %p129 = scmp.ne.s32.totalorder %s117, %s118
      %p130 = scmp.eq.s32.totalorder %s24, 1
      %p131 = por %p129, %p130
      %p133 = scmp.ne.s32.totalorder %s118, %s132
      %p134 = scmp.eq.s32.totalorder %s24, 0
      %p135 = por %p133, %p134
      %s136 = ssub.s32 %s18, %s25
      %p137 = scmp.eq.s32.totalorder %s136, 0
      %s139 = sadd.s32 %s138, 1
      %s140 = scalar_select %p137, %s138, %s139
      %p143 = pneg %p137
      %p144 = scmp.eq.s32.totalorder %s18, 1
      %p145 = por %p143, %p144
      %p146 = scmp.ne.s32.totalorder %s138, %s141
      %p147 = scmp.eq.s32.totalorder %s18, 0
      %p148 = por %p146, %p147
      %p149 = scmp.ne.s32.totalorder %s138, %s141
      %p150 = scmp.eq.s32.totalorder %s23, 1
      %p151 = por %p149, %p150
      %p152 = scmp.ne.s32.totalorder %s141, %s142
      %p153 = scmp.eq.s32.totalorder %s23, 0
      %p154 = por %p152, %p153
      %p155 = scmp.ne.s32.totalorder %s141, %s142
      %p156 = scmp.eq.s32.totalorder %s24, 1
      %p157 = por %p155, %p156
      %p159 = scmp.ne.s32.totalorder %s142, %s158
      %p160 = scmp.eq.s32.totalorder %s24, 0
      %p161 = por %p159, %p160
      %p162 = scmp.le.s32.totalorder 1, %s18
      %p163 = scmp.lt.s32.totalorder %s18, 3
      %p164 = pnand %p162, %p163
      %p165 = pneg %p164
      // Predicated region
      $region9: #{tpu_custom_call.1} parent=5 // pred_check
        _
      $region10: #{tpu_custom_call.1} parent=5 // pred_check_branch
        %167 = sbr.rel (%p164) target = $region12
      $region11: #{tpu_custom_call.1} parent=5 // pred_region
        %s168 = ssub.s32 %s18, 1
        // Predicated region
        $region13: #{tpu_custom_call.1} parent=11 // pred_check
          %p169 = pneg %p65
        $region14: #{tpu_custom_call.1} parent=11 // pred_check_branch
          %171 = sbr.rel (%p169) target = $region16
        $region15: #{tpu_custom_call.1} parent=11 // pred_region
          %s173 = ssub.s32 2048, 2048
          %174 = vsyncadd [#allocation6], %s173
          %s175 = sshll.u32 [#allocation5], 4
          %s176 = int_to_ptr.vmem [resolvable:$true] %s175
          %181 = dma.hbm_to_vmem [thread:$0]  %s1, 2048, %s176, [#allocation6], 64, 64, 4
        $region16: #{tpu_custom_call.1} parent=11 // pred_fallthru
          _
        // Predicated region
        $region17: #{tpu_custom_call.1} parent=11 // pred_check
          %p182 = pneg %p86
        $region18: #{tpu_custom_call.1} parent=11 // pred_check_branch
          %184 = sbr.rel (%p182) target = $region20
        $region19: #{tpu_custom_call.1} parent=11 // pred_region
          _
        $region20: #{tpu_custom_call.1} parent=11 // pred_fallthru
          _
        // Predicated region
        $region21: #{tpu_custom_call.1} parent=11 // pred_check
          %p185 = pneg %p107
        $region22: #{tpu_custom_call.1} parent=11 // pred_check_branch
          %187 = sbr.rel (%p185) target = $region24
        $region23: #{tpu_custom_call.1} parent=11 // pred_region
          %s189 = ssub.s32 2048, 2048
          %190 = vsyncadd [#allocation6], %s189
          %s191 = sshll.u32 [#allocation7], 4
          %s192 = int_to_ptr.vmem [resolvable:$true] %s191
          %197 = dma.hbm_to_vmem [thread:$0]  %s3, 2048, %s192, [#allocation6], 128, 128, 8
        $region24: #{tpu_custom_call.1} parent=11 // pred_fallthru
          _
        // Predicated region
        $region25: #{tpu_custom_call.1} parent=11 // pred_check
          %p198 = pneg %p128
        $region26: #{tpu_custom_call.1} parent=11 // pred_check_branch
          %200 = sbr.rel (%p198) target = $region28
        $region27: #{tpu_custom_call.1} parent=11 // pred_region
          _
        $region28: #{tpu_custom_call.1} parent=11 // pred_fallthru
          _
      $region12: #{tpu_custom_call.1} parent=5 // pred_fallthru
        _
      %p201 = scmp.lt.s32.totalorder %s18, 2
      // Predicated region
      $region29: #{tpu_custom_call.1} parent=5 // pred_check
        %p202 = pneg %p201
      $region30: #{tpu_custom_call.1} parent=5 // pred_check_branch
        %204 = sbr.rel (%p202) target = $region32
      $region31: #{tpu_custom_call.1} parent=5 // pred_region
        // Predicated region
        $region33: #{tpu_custom_call.1} parent=31 // pred_check
          %p205 = pneg %p38
        $region34: #{tpu_custom_call.1} parent=31 // pred_check_branch
          %207 = sbr.rel (%p205) target = $region36
        $region35: #{tpu_custom_call.1} parent=31 // pred_region
          %s208 = sand.u32 %s28, 1
          %s209 = scalar_lea.sflag [#allocation3], %s208
          %s210 = sand.u32 %s28, 1
          %s211 = smul.addr %s210, 8
          %s212 = scalar_lea.vmem [#allocation2], %s211
          %s214 = ssub.s32 128, 128
          %215 = vsyncadd %s209, %s214
          %s216 = smul.addr %s18, 2
          %s217 = smul.addr %s216, 64
          %s218 = scalar_lea.hbm %s0, %s217
          %s220 = sshll.u32 %s212, 4
          %s221 = int_to_ptr.vmem [resolvable:$true] %s220
          %223 = dma.hbm_to_vmem [thread:$0]  %s218, 128, %s221, %s209
        $region36: #{tpu_custom_call.1} parent=31 // pred_fallthru
          _
      $region32: #{tpu_custom_call.1} parent=5 // pred_fallthru
        _
      %p224 = scmp.le.s32.totalorder 1, %s18
      %p225 = scmp.lt.s32.totalorder %s18, 3
      %p226 = pnand %p224, %p225
      %p227 = pneg %p226
      // Predicated region
      $region37: #{tpu_custom_call.1} parent=5 // pred_check
        _
      $region38: #{tpu_custom_call.1} parent=5 // pred_check_branch
        %229 = sbr.rel (%p226) target = $region40
      $region39: #{tpu_custom_call.1} parent=5 // pred_region
        %s230 = ssub.s32 %s18, 1
        %s231 = sand.u32 %s31, 1
        %s232 = scalar_lea.sflag [#allocation3], %s231
        %s233 = sand.u32 %s31, 1
        %s234 = smul.addr %s233, 8
        %s235 = scalar_lea.vmem [#allocation2], %s234
        // Predicated region
        $region41: #{tpu_custom_call.1} parent=39 // pred_check
          %p236 = pneg %p44
        $region42: #{tpu_custom_call.1} parent=39 // pred_check_branch
          %238 = sbr.rel (%p236) target = $region44
        $region43: #{tpu_custom_call.1} parent=39 // pred_region
          %239 = dma.done %s232, 128
        $region44: #{tpu_custom_call.1} parent=39 // pred_fallthru
          _
        // Predicated region
        $region45: #{tpu_custom_call.1} parent=39 // pred_check
          %p240 = pneg %p65
        $region46: #{tpu_custom_call.1} parent=39 // pred_check_branch
          %242 = sbr.rel (%p240) target = $region48
        $region47: #{tpu_custom_call.1} parent=39 // pred_region
          %243 = dma.done [#allocation6], 2048
        $region48: #{tpu_custom_call.1} parent=39 // pred_fallthru
          _
        // Predicated region
        $region49: #{tpu_custom_call.1} parent=39 // pred_check
          %p244 = pneg %p107
        $region50: #{tpu_custom_call.1} parent=39 // pred_check_branch
          %246 = sbr.rel (%p244) target = $region52
        $region51: #{tpu_custom_call.1} parent=39 // pred_region
          %247 = dma.done [#allocation6], 2048
        $region52: #{tpu_custom_call.1} parent=39 // pred_fallthru
          _
        %s248 = sand.u32 %s31, 1
        %s249 = scalar_lea.sflag [#allocation3], %s248
        %s250 = sand.u32 %s31, 1
        %s251 = smul.addr %s250, 8
        %s252 = scalar_lea.vmem [#allocation2], %s251
        %p253 = pneg %p44
        %p254 = pneg %p41
        %p255 = pneg %p65
        %p256 = pneg %p62
        %p257 = pneg %p86
        %p258 = pneg %p83
        %p259 = pneg %p107
        %p260 = pneg %p104
        %p261 = pneg %p128
        %p262 = pneg %p125
        %p263 = pneg %p154
        %p264 = pneg %p151
        %s265 = sand.u32 %s141, 1
        %s266 = scalar_lea.sflag [#allocation4], %s265
        %s267 = sand.u32 %s141, 1
        %s268 = smul.addr %s267, 16
        %s269 = scalar_lea.vmem [#allocation8], %s268
        %v271 = vld [vmem:[%s235] sm:$0xff]
        %v272 = vld [vmem:[#allocation5] sm:$0xf]
        %v273 = vld [vmem:[#allocation5 + $0x4] sm:$0xf]
        %v274 = vld [vmem:[#allocation5 + $0x8] sm:$0xf]
        %v275 = vld [vmem:[#allocation5 + $0xc] sm:$0xf]
        %v276 = vld [vmem:[#allocation5 + $0x10] sm:$0xf]
        %v277 = vld [vmem:[#allocation5 + $0x14] sm:$0xf]
        %v278 = vld [vmem:[#allocation5 + $0x18] sm:$0xf]
        %v279 = vld [vmem:[#allocation5 + $0x1c] sm:$0xf]
        %v280 = vld [vmem:[#allocation5 + $0x20] sm:$0xf]
        %v281 = vld [vmem:[#allocation5 + $0x24] sm:$0xf]
        %v282 = vld [vmem:[#allocation5 + $0x28] sm:$0xf]
        %v283 = vld [vmem:[#allocation5 + $0x2c] sm:$0xf]
        %v284 = vld [vmem:[#allocation5 + $0x30] sm:$0xf]
        %v285 = vld [vmem:[#allocation5 + $0x34] sm:$0xf]
        %v286 = vld [vmem:[#allocation5 + $0x38] sm:$0xf]
        %v287 = vld [vmem:[#allocation5 + $0x3c] sm:$0xf]
        %v288 = vld [vmem:[#allocation5 + $0x40] sm:$0xf]
        %v289 = vld [vmem:[#allocation5 + $0x44] sm:$0xf]
        %v290 = vld [vmem:[#allocation5 + $0x48] sm:$0xf]
        %v291 = vld [vmem:[#allocation5 + $0x4c] sm:$0xf]
        %v292 = vld [vmem:[#allocation5 + $0x50] sm:$0xf]
        %v293 = vld [vmem:[#allocation5 + $0x54] sm:$0xf]
        %v294 = vld [vmem:[#allocation5 + $0x58] sm:$0xf]
        %v295 = vld [vmem:[#allocation5 + $0x5c] sm:$0xf]
        %v296 = vld [vmem:[#allocation5 + $0x60] sm:$0xf]
        %v297 = vld [vmem:[#allocation5 + $0x64] sm:$0xf]
        %v298 = vld [vmem:[#allocation5 + $0x68] sm:$0xf]
        %v299 = vld [vmem:[#allocation5 + $0x6c] sm:$0xf]
        %v300 = vld [vmem:[#allocation5 + $0x70] sm:$0xf]
        %v301 = vld [vmem:[#allocation5 + $0x74] sm:$0xf]
        %v302 = vld [vmem:[#allocation5 + $0x78] sm:$0xf]
        %v303 = vld [vmem:[#allocation5 + $0x7c] sm:$0xf]
        %v304 = vld [vmem:[%s2] sm:$0x1]
        %v306 = vlaneseq
        %v307 = vshrl.u32 %v306, 7
        %v308 = vsub.s32 0, %v307
        %v309 = vrot.slane %v304, %v308
        %v312 = vunpack.c.l.b16 %v271
        %v313 = vunpack.c.h.b16 %v271
        %v314 = vpack.c.b16 %v312, %v312
        %v315 = vpack.c.b16 %v313, %v313
        %v350 = vunpack.c.l.b16 %v272
        %v351 = vunpack.c.l.b16 %v273
        %v352 = vunpack.c.l.b16 %v274
        %v353 = vunpack.c.l.b16 %v275
        %v354 = vunpack.c.l.b16 %v276
        %v355 = vunpack.c.l.b16 %v277
        %v356 = vunpack.c.l.b16 %v278
        %v357 = vunpack.c.l.b16 %v279
        %v358 = vunpack.c.l.b16 %v280
        %v359 = vunpack.c.l.b16 %v281
        %v360 = vunpack.c.l.b16 %v282
        %v361 = vunpack.c.l.b16 %v283
        %v362 = vunpack.c.l.b16 %v284
        %v363 = vunpack.c.l.b16 %v285
        %v364 = vunpack.c.l.b16 %v286
        %v365 = vunpack.c.l.b16 %v287
        %v366 = vunpack.c.l.b16 %v288
        %v367 = vunpack.c.l.b16 %v289
        %v368 = vunpack.c.l.b16 %v290
        %v369 = vunpack.c.l.b16 %v291
        %v370 = vunpack.c.l.b16 %v292
        %v371 = vunpack.c.l.b16 %v293
        %v372 = vunpack.c.l.b16 %v294
        %v373 = vunpack.c.l.b16 %v295
        %v374 = vunpack.c.l.b16 %v296
        %v375 = vunpack.c.l.b16 %v297
        %v376 = vunpack.c.l.b16 %v298
        %v377 = vunpack.c.l.b16 %v299
        %v378 = vunpack.c.l.b16 %v300
        %v379 = vunpack.c.l.b16 %v301
        %v380 = vunpack.c.l.b16 %v302
        %v381 = vunpack.c.l.b16 %v303
        %v382 = vpack.c.b16 %v351, %v350
        %v383 = vpack.c.b16 %v353, %v352
        %v384 = vpack.c.b16 %v355, %v354
        %v385 = vpack.c.b16 %v357, %v356
        %v386 = vpack.c.b16 %v359, %v358
        %v387 = vpack.c.b16 %v361, %v360
        %v388 = vpack.c.b16 %v363, %v362
        %v389 = vpack.c.b16 %v365, %v364
        %v390 = vpack.c.b16 %v367, %v366
        %v391 = vpack.c.b16 %v369, %v368
        %v392 = vpack.c.b16 %v371, %v370
        %v393 = vpack.c.b16 %v373, %v372
        %v394 = vpack.c.b16 %v375, %v374
        %v395 = vpack.c.b16 %v377, %v376
        %v396 = vpack.c.b16 %v379, %v378
        %v397 = vpack.c.b16 %v381, %v380
        %414 = vmatprep.subr.bf16.mxu0 0
        %415 = vmatpush1.bf16.msra.mxu0 %v382
        %416 = vmatprep.subr.bf16.mxu0 0
        %417 = vmatpush1.bf16.msra.mxu0 %v383
        %418 = vmatprep.subr.bf16.mxu0 0
        %419 = vmatpush1.bf16.msra.mxu0 %v384
        %420 = vmatprep.subr.bf16.mxu0 0
        %421 = vmatpush1.bf16.msra.mxu0 %v385
        %422 = vmatprep.subr.bf16.mxu0 0
        %423 = vmatpush1.bf16.msra.mxu0 %v386
        %424 = vmatprep.subr.bf16.mxu0 0
        %425 = vmatpush1.bf16.msra.mxu0 %v387
        %426 = vmatprep.subr.bf16.mxu0 0
        %427 = vmatpush1.bf16.msra.mxu0 %v388
        %428 = vmatprep.subr.bf16.mxu0 0
        %429 = vmatpush1.bf16.msra.mxu0 %v389
        %430 = vmatprep.subr.bf16.mxu0 0
        %431 = vmatpush1.bf16.msra.mxu0 %v390
        %432 = vmatprep.subr.bf16.mxu0 0
        %433 = vmatpush1.bf16.msra.mxu0 %v391
        %434 = vmatprep.subr.bf16.mxu0 0
        %435 = vmatpush1.bf16.msra.mxu0 %v392
        %436 = vmatprep.subr.bf16.mxu0 0
        %437 = vmatpush1.bf16.msra.mxu0 %v393
        %438 = vmatprep.subr.bf16.mxu0 0
        %439 = vmatpush1.bf16.msra.mxu0 %v394
        %440 = vmatprep.subr.bf16.mxu0 0
        %441 = vmatpush1.bf16.msra.mxu0 %v395
        %442 = vmatprep.subr.bf16.mxu0 0
        %443 = vmatpush1.bf16.msra.mxu0 %v396
        %444 = vmatprep.subr.bf16.mxu0 0
        %445 = vmatpush1.bf16.msra.mxu0 %v397
        %446 = vmatprep.mubr.bf16.mxu0 %v315
        %447 = vmatmul.mubr.bf16.gmra.mrb[0].mxu0 %v314
        %v448 = vpop.f32.mrb[0].mxu0
        %v449 = vadd.f32 %v309, %v448
        %v450 = vpop.f32.mrb[0].mxu0
        %v451 = vpop.f32.mrb[0].mxu0
        %v452 = vpop.f32.mrb[0].mxu0
        %453 = vdwg.mxu0
        %v454 = vmax.f32 %v449, 0.0
        %v455 = vpack.c.bf16 %v454, %v454
        %v456 = vld [vmem:[#allocation7] sm:$0xff]
        %v457 = vld [vmem:[#allocation7 + $0x8] sm:$0xff]
        %v458 = vld [vmem:[#allocation7 + $0x10] sm:$0xff]
        %v459 = vld [vmem:[#allocation7 + $0x18] sm:$0xff]
        %v460 = vld [vmem:[#allocation7 + $0x20] sm:$0xff]
        %v461 = vld [vmem:[#allocation7 + $0x28] sm:$0xff]
        %v462 = vld [vmem:[#allocation7 + $0x30] sm:$0xff]
        %v463 = vld [vmem:[#allocation7 + $0x38] sm:$0xff]
        %v464 = vld [vmem:[#allocation7 + $0x40] sm:$0xff]
        %v465 = vld [vmem:[#allocation7 + $0x48] sm:$0xff]
        %v466 = vld [vmem:[#allocation7 + $0x50] sm:$0xff]
        %v467 = vld [vmem:[#allocation7 + $0x58] sm:$0xff]
        %v468 = vld [vmem:[#allocation7 + $0x60] sm:$0xff]
        %v469 = vld [vmem:[#allocation7 + $0x68] sm:$0xff]
        %v470 = vld [vmem:[#allocation7 + $0x70] sm:$0xff]
        %v471 = vld [vmem:[#allocation7 + $0x78] sm:$0xff]
        %v472 = vld [vmem:[%s4] sm:$0x3]
        %v474 = vlaneseq
        %v475 = vshrl.u32 %v474, 7
        %v476 = vsub.s32 0, %v475
        %v477 = vrot.slane %v472, %v476
        %v478 = vlaneseq
        %v479 = vshrl.u32 %v478, 7
        %v480 = vsub.s32 1, %v479
        %v481 = vrot.slane %v472, %v480
        %v500 = vunpack.c.l.b16 %v456
        %v501 = vunpack.c.h.b16 %v456
        %v502 = vunpack.c.l.b16 %v457
        %v503 = vunpack.c.h.b16 %v457
        %v504 = vunpack.c.l.b16 %v458
        %v505 = vunpack.c.h.b16 %v458
        %v506 = vunpack.c.l.b16 %v459
        %v507 = vunpack.c.h.b16 %v459
        %v508 = vunpack.c.l.b16 %v460
        %v509 = vunpack.c.h.b16 %v460
        %v510 = vunpack.c.l.b16 %v461
        %v511 = vunpack.c.h.b16 %v461
        %v512 = vunpack.c.l.b16 %v462
        %v513 = vunpack.c.h.b16 %v462
        %v514 = vunpack.c.l.b16 %v463
        %v515 = vunpack.c.h.b16 %v463
        %v516 = vunpack.c.l.b16 %v464
        %v517 = vunpack.c.h.b16 %v464
        %v518 = vunpack.c.l.b16 %v465
        %v519 = vunpack.c.h.b16 %v465
        %v520 = vunpack.c.l.b16 %v466
        %v521 = vunpack.c.h.b16 %v466
        %v522 = vunpack.c.l.b16 %v467
        %v523 = vunpack.c.h.b16 %v467
        %v524 = vunpack.c.l.b16 %v468
        %v525 = vunpack.c.h.b16 %v468
        %v526 = vunpack.c.l.b16 %v469
        %v527 = vunpack.c.h.b16 %v469
        %v528 = vunpack.c.l.b16 %v470
        %v529 = vunpack.c.h.b16 %v470
        %v530 = vunpack.c.l.b16 %v471
        %v531 = vunpack.c.h.b16 %v471
        %v532 = vpack.c.b16 %v502, %v500
        %v533 = vpack.c.b16 %v503, %v501
        %v534 = vpack.c.b16 %v506, %v504
        %v535 = vpack.c.b16 %v507, %v505
        %v536 = vpack.c.b16 %v510, %v508
        %v537 = vpack.c.b16 %v511, %v509
        %v538 = vpack.c.b16 %v514, %v512
        %v539 = vpack.c.b16 %v515, %v513
        %v540 = vpack.c.b16 %v518, %v516
        %v541 = vpack.c.b16 %v519, %v517
        %v542 = vpack.c.b16 %v522, %v520
        %v543 = vpack.c.b16 %v523, %v521
        %v544 = vpack.c.b16 %v526, %v524
        %v545 = vpack.c.b16 %v527, %v525
        %v546 = vpack.c.b16 %v530, %v528
        %v547 = vpack.c.b16 %v531, %v529
        %564 = vmatprep.subr.bf16.mxu0 %v533
        %565 = vmatpush1.bf16.msra.mxu0 %v532
        %566 = vmatprep.subr.bf16.mxu0 %v535
        %567 = vmatpush1.bf16.msra.mxu0 %v534
        %568 = vmatprep.subr.bf16.mxu0 %v537
        %569 = vmatpush1.bf16.msra.mxu0 %v536
        %570 = vmatprep.subr.bf16.mxu0 %v539
        %571 = vmatpush1.bf16.msra.mxu0 %v538
        %572 = vmatprep.subr.bf16.mxu0 %v541
        %573 = vmatpush1.bf16.msra.mxu0 %v540
        %574 = vmatprep.subr.bf16.mxu0 %v543
        %575 = vmatpush1.bf16.msra.mxu0 %v542
        %576 = vmatprep.subr.bf16.mxu0 %v545
        %577 = vmatpush1.bf16.msra.mxu0 %v544
        %578 = vmatprep.subr.bf16.mxu0 %v547
        %579 = vmatpush1.bf16.msra.mxu0 %v546
        %580 = vmatprep.subr.bf16.mxu0 0
        %581 = vmatpush1.bf16.msra.mxu0 0
        %582 = vmatprep.subr.bf16.mxu0 0
        %583 = vmatpush1.bf16.msra.mxu0 0
        %584 = vmatprep.subr.bf16.mxu0 0
        %585 = vmatpush1.bf16.msra.mxu0 0
        %586 = vmatprep.subr.bf16.mxu0 0
        %587 = vmatpush1.bf16.msra.mxu0 0
        %588 = vmatprep.subr.bf16.mxu0 0
        %589 = vmatpush1.bf16.msra.mxu0 0
        %590 = vmatprep.subr.bf16.mxu0 0
        %591 = vmatpush1.bf16.msra.mxu0 0
        %592 = vmatprep.subr.bf16.mxu0 0
        %593 = vmatpush1.bf16.msra.mxu0 0
        %594 = vmatprep.subr.bf16.mxu0 0
        %595 = vmatpush1.bf16.msra.mxu0 0
        %596 = vmatprep.mubr.bf16.mxu0 0
        %597 = vmatmul.mubr.bf16.gmra.mrb[0].mxu0 %v455
        %v598 = vpop.f32.mrb[0].mxu0
        %v599 = vadd.f32 %v477, %v598
        %v600 = vpop.f32.mrb[0].mxu0
        %v601 = vadd.f32 %v481, %v600
        %v602 = vpop.f32.mrb[0].mxu0
        %v603 = vpop.f32.mrb[0].mxu0
        %604 = vdwg.mxu0
        %605 = vst [vmem:[%s269] sm:$0xff] %v599
        %606 = vst [vmem:[%s269 + $0x8] sm:$0xff] %v601
        %s607 = sand.u32 %s141, 1
        %s608 = scalar_lea.sflag [#allocation4], %s607
        %s609 = sand.u32 %s141, 1
        %s610 = smul.addr %s609, 16
        %s611 = scalar_lea.vmem [#allocation8], %s610
        // Predicated region
        $region53: #{tpu_custom_call.1} parent=39 // pred_check
          %p612 = pneg %p151
        $region54: #{tpu_custom_call.1} parent=39 // pred_check_branch
          %614 = sbr.rel (%p612) target = $region56
        $region55: #{tpu_custom_call.1} parent=39 // pred_region
          %s616 = ssub.s32 256, 256
          %617 = vsyncadd %s608, %s616
          %s618 = smul.addr %s23, 2
          %s619 = smul.addr %s618, 128
          %s620 = scalar_lea.hbm %s5, %s619
          %s622 = sshll.u32 %s611, 4
          %s623 = int_to_ptr.vmem [resolvable:$true] %s622
          %625 = dma.vmem_to_hbm [thread:$0]  %s623, 256, %s620, %s608
        $region56: #{tpu_custom_call.1} parent=39 // pred_fallthru
          _
      $region40: #{tpu_custom_call.1} parent=5 // pred_fallthru
        _
      %p626 = scmp.le.s32.totalorder 2, %s18
      // Predicated region
      $region57: #{tpu_custom_call.1} parent=5 // pred_check
        %p627 = pneg %p626
      $region58: #{tpu_custom_call.1} parent=5 // pred_check_branch
        %629 = sbr.rel (%p627) target = $region60
      $region59: #{tpu_custom_call.1} parent=5 // pred_region
        %s630 = ssub.s32 %s18, 2
        // Predicated region
        $region61: #{tpu_custom_call.1} parent=59 // pred_check
          %p631 = pneg %p157
        $region62: #{tpu_custom_call.1} parent=59 // pred_check_branch
          %633 = sbr.rel (%p631) target = $region64
        $region63: #{tpu_custom_call.1} parent=59 // pred_region
          %s634 = sand.u32 %s142, 1
          %s635 = scalar_lea.sflag [#allocation4], %s634
          %s636 = sand.u32 %s142, 1
          %s637 = smul.addr %s636, 16
          %s638 = scalar_lea.vmem [#allocation8], %s637
          %639 = dma.done %s635, 256
        $region64: #{tpu_custom_call.1} parent=59 // pred_fallthru
          _
      $region60: #{tpu_custom_call.1} parent=5 // pred_fallthru
        _
    $region6: #{tpu_custom_call.1} parent=1 // loop_footer
      %s22 = sadd.s32 1, %s18
    $region7: #{tpu_custom_call.1} parent=1 // loop_footer_branch
      %17 = sbr.rel target = $region3
    $region8: #{tpu_custom_call.1} parent=1 // loop_exit
      _
    %640 = vsyncpa [#allocation3], 1
    %s641 = scalar_lea.sflag [#allocation3], 1
    %642 = vsyncpa %s641, 1
    %643 = vsyncpa [#allocation6], 1
    %644 = vsyncpa [#allocation4], 1
    %s645 = scalar_lea.sflag [#allocation4], 1
    %646 = vsyncpa %s645, 1

</llo_original>
